<compile_context>
chip_gen: v7x
topology: tpu7x:2x2x1
jax: 0.10.0
libtpu: 0.0.40
codegen_flags: <defaults>
</compile_context>

<pallas_src>
import functools

import jax
import jax.numpy as jnp
from jax.experimental import pallas as pl
from jax.experimental.pallas import tpu as pltpu


_LANES = 128
_BLOCK_BYTES = int(2.5 * 1024 * 1024)   # per-input, per-block cap (v5e-safe)
_TB_MAX = 64                             # bounds the per-sample flush unroll


def _l2_partial_kernel(o_ref, t_ref, out_ref, acc_ref, *,
                       tiles_per_chunk, n_valid_tiles, valid_rows_last,
                       ragged_last, has_invalid_tiles, fold):
    """One (batch-tile, chunk, pixel-tile) grid step.

    o_ref, t_ref : (TB, C, S, 128) VMEM tiles -- pixels packed on (S, 128).
    out_ref      : (TB, 1) SMEM block -- per-sample sum of per-pixel L2 norms.
    acc_ref      : (TB, A, 128) f32 VMEM scratch -- per-lane partial sums.
    """
    ci = pl.program_id(1)                 # pixel-chunk (v7x megacore split)
    pj = pl.program_id(2)                 # pixel tile within chunk
    nj = pl.num_programs(2)
    gt = ci * tiles_per_chunk + pj        # global pixel-tile index

    @pl.when(pj == 0)
    def _():
        acc_ref[...] = jnp.zeros_like(acc_ref)

    def accumulate(row_limit):
        o = o_ref[...].astype(jnp.float32)        # (TB, C, S, 128)
        t = t_ref[...].astype(jnp.float32)
        d = o - t
        ssq = jnp.sum(d * d, axis=1)              # (TB, S, 128): channel reduce = VPU adds
        norms = jnp.sqrt(ssq)                     # per-pixel L2 norm
        if row_limit is not None:
            tb_, s_, l_ = norms.shape
            row = jax.lax.broadcasted_iota(jnp.int32, (tb_, s_, l_), 1)
            # Select (not multiply) so garbage rows of a partial last tile
            # cannot propagate NaN/Inf into the accumulator.
            norms = jnp.where(row < row_limit, norms, 0.0)
        if fold:
            # Free reshape: split the sublane axis into vreg groups, then sum
            # across groups with plain VPU adds -> (TB, 8, 128) accumulator.
            tb_, s_, l_ = norms.shape
            norms = jnp.sum(norms.reshape(tb_, s_ // 8, 8, l_), axis=1)
        acc_ref[...] += norms

    if (not ragged_last) and (not has_invalid_tiles):
        # Fast path: every tile is full and valid; no per-tile masking at all.
        accumulate(None)
    else:
        @pl.when(gt < n_valid_tiles - 1)
        def _():
            accumulate(None)                      # plain path for all but last

        @pl.when(gt == n_valid_tiles - 1)
        def _():
            accumulate(valid_rows_last if ragged_last else None)
        # gt >= n_valid_tiles (padded tiles of an uneven chunk split): skip.

    @pl.when(pj == nj - 1)
    def _():
        # One cross-lane/sublane reduction + scalar SMEM store per sample.
        for b in range(out_ref.shape[0]):
            out_ref[b, 0] = jnp.sum(acc_ref[b])


@functools.partial(jax.jit, static_argnames=("s_rows_max",))
def _l2_mean_norm(output, target, s_rows_max=2048):
    """mean over (N, *spatial) of || output - target ||_2 along the channel dim."""
    n, c = output.shape[0], output.shape[1]
    m = 1
    for d in output.shape[2:]:
        m *= int(d)

    if m == 0 or m % _LANES != 0:
        # Lane-ragged pixel count: padding/slicing both tensors in the wrapper
        # would double HBM traffic for a mem-bound op, so let XLA do the
        # single-pass fused reduction (each tensor read exactly once).
        # TODO(synk): flat-layout (N, C, M) Pallas kernel with an in-kernel
        # lane mask so this path stays in Pallas too.
        diff = output.astype(jnp.float32) - target.astype(jnp.float32)
        return jnp.mean(jnp.sqrt(jnp.sum(diff * diff, axis=1))).astype(jnp.float32)

    p = m // _LANES
    o4 = output.reshape(n, c, p, _LANES)      # free row-major view
    t4 = target.reshape(n, c, p, _LANES)

    # dtype-aware sizing: sublane multiple 8 (f32) / 16 (bf16) / 32 (int8/fp8).
    min_item = min(jnp.dtype(output.dtype).itemsize, jnp.dtype(target.dtype).itemsize)
    max_item = max(jnp.dtype(output.dtype).itemsize, jnp.dtype(target.dtype).itemsize)
    sub_mult = max(8, 32 // max(1, min_item))
    row_bytes = c * _LANES * max_item

    tile_rows = min(
        max(sub_mult, (int(s_rows_max) // sub_mult) * sub_mult),
        max(sub_mult, (_BLOCK_BYTES // row_bytes) // sub_mult * sub_mult))
    s_rows = p if p <= tile_rows else tile_rows
    n_tiles = pl.cdiv(p, s_rows)

    # Batch folding: only when one block covers the whole per-sample plane.
    if s_rows == p:
        per_sample_bytes = row_bytes * p
        tb_cap = max(1, min(_TB_MAX, _BLOCK_BYTES // max(1, per_sample_bytes)))
    else:
        tb_cap = 1
    tb = 1
    for cand in range(min(n, tb_cap), 0, -1):
        if n % cand == 0:
            tb = cand
            break
    n_batch_tiles = n // tb

    # v7x megacore: if the (parallel) batch axis is a single tile, split the
    # pixel-tile range into 2 parallel chunks. No-op on single-TC v5e/v6e.
    n_chunks = 2 if (n_batch_tiles == 1 and n_tiles >= 2) else 1
    tiles_per_chunk = pl.cdiv(n_tiles, n_chunks)
    has_invalid_tiles = (n_chunks * tiles_per_chunk != n_tiles)
    valid_rows_last = p - (n_tiles - 1) * s_rows
    ragged_last = (valid_rows_last != s_rows)

    # Compact accumulator: fold to 8 sublane rows whenever the tile allows it.
    fold = (s_rows % 8 == 0) and (s_rows > 8)
    acc_rows = 8 if fold else s_rows

    # Explicit scoped-VMEM budget: 2 inputs x 2 pipeline buffers + scratch.
    block_bytes = tb * c * s_rows * _LANES * max_item
    acc_bytes = tb * acc_rows * _LANES * 4
    vmem_limit = int(max(4 * block_bytes + acc_bytes + (2 << 20), 16 << 20))

    kernel = functools.partial(
        _l2_partial_kernel,
        tiles_per_chunk=tiles_per_chunk,
        n_valid_tiles=n_tiles,
        valid_rows_last=valid_rows_last,
        ragged_last=ragged_last,
        has_invalid_tiles=has_invalid_tiles,
        fold=fold,
    )

    def in_map(bi, ci, pj):
        # Clamp so padded tiles of an uneven chunk split never DMA out of
        # bounds; their compute is skipped inside the kernel.
        gt = jnp.minimum(ci * tiles_per_chunk + pj, n_tiles - 1)
        return (bi, 0, gt, 0)

    partials = pl.pallas_call(
        kernel,
        out_shape=jax.ShapeDtypeStruct((n, n_chunks), jnp.float32),
        grid_spec=pltpu.PrefetchScalarGridSpec(
            num_scalar_prefetch=0,
            grid=(n_batch_tiles, n_chunks, tiles_per_chunk),
            in_specs=[
                pl.BlockSpec((tb, c, s_rows, _LANES), in_map),
                pl.BlockSpec((tb, c, s_rows, _LANES), in_map),
            ],
            out_specs=pl.BlockSpec(
                (tb, 1), lambda bi, ci, pj: (bi, ci), memory_space=pltpu.SMEM),
            scratch_shapes=[pltpu.VMEM((tb, acc_rows, _LANES), jnp.float32)],
        ),
        compiler_params=pltpu.CompilerParams(
            dimension_semantics=("parallel", "parallel", "arbitrary"),
            vmem_limit_bytes=vmem_limit),
    )(o4, t4)

    return (jnp.sum(partials) / jnp.float32(n * m)).astype(jnp.float32)


class L2:
    """JAX/Pallas port of STGAT L2: mean over pixels of channel-wise L2 norm."""

    def __call__(self, output, target):
        return _l2_mean_norm(output, target)


def _reference(output, target):
    diff = output.astype(jnp.float32) - target.astype(jnp.float32)
    return jnp.mean(jnp.sqrt(jnp.sum(diff * diff, axis=1)))


if __name__ == "__main__":
    key = jax.random.PRNGKey(0)
    k1, k2, k3, k4, k5, k6, k7, k8 = jax.random.split(key, 8)

    # Test 1: small flow-like NCHW tensors -> batch-folded single-step path.
    output = jax.random.normal(k1, (2, 4, 16, 16), dtype=jnp.float32)
    target = jax.random.normal(k2, (2, 4, 16, 16), dtype=jnp.float32)
    loss = jax.block_until_ready(L2()(output, target))
    ref = _reference(output, target)
    assert jnp.allclose(loss, ref, rtol=1e-4, atol=1e-5), (loss, ref)

    # Test 2: force tiny pixel tiles -> multi-tile accumulation, ragged last
    # tile (masked only on the last tile), and the 2-chunk megacore split with
    # an uneven chunk (padded tile skipped in-kernel).
    o2 = jax.random.normal(k3, (1, 2, 40, 64), dtype=jnp.float32)
    t2 = jax.random.normal(k4, (1, 2, 40, 64), dtype=jnp.float32)
    loss2 = jax.block_until_ready(_l2_mean_norm(o2, t2, s_rows_max=8))
    ref2 = _reference(o2, t2)
    assert jnp.allclose(loss2, ref2, rtol=1e-4, atol=1e-5), (loss2, ref2)

    # Test 3: bf16 inputs -> in-kernel upcast + sublane-folded (TB,8,128) acc.
    o3 = jax.random.normal(k5, (2, 2, 32, 64), dtype=jnp.bfloat16)
    t3 = jax.random.normal(k6, (2, 2, 32, 64), dtype=jnp.bfloat16)
    loss3 = jax.block_until_ready(_l2_mean_norm(o3, t3))
    ref3 = _reference(o3, t3)
    assert jnp.allclose(loss3, ref3, rtol=1e-4, atol=1e-5), (loss3, ref3)

    # Test 4: lane-ragged pixel count (H*W % 128 != 0) -> no-pad XLA fallback.
    o4_ = jax.random.normal(k7, (2, 3, 10, 15), dtype=jnp.float32)
    t4_ = jax.random.normal(k8, (2, 3, 10, 15), dtype=jnp.float32)
    loss4 = jax.block_until_ready(_l2_mean_norm(o4_, t4_))
    ref4 = _reference(o4_, t4_)
    assert jnp.allclose(loss4, ref4, rtol=1e-4, atol=1e-5), (loss4, ref4)

    print("KERNEL_OK")
</pallas_src>

<mosaic_0001>
module attributes {stable_mosaic.version = 11 : i64} {
  func.func @_l2_partial_kernel(%arg0: i32, %arg1: i32, %arg2: i32, %arg3: memref<2x4x2x128xf32, #tpu.memory_space<vmem>>, %arg4: memref<2x4x2x128xf32, #tpu.memory_space<vmem>>, %arg5: memref<2x1xf32, #tpu.memory_space<smem>>, %arg6: memref<2x2x128xf32, #tpu.memory_space<vmem>>) attributes {dimension_semantics = [#tpu.dimension_semantics<parallel>, #tpu.dimension_semantics<parallel>, #tpu.dimension_semantics<arbitrary>], iteration_bounds = array<i64: 1, 1, 1>, scalar_prefetch = 0 : i64, scratch_operands = 1 : i64, tpu.core_type = #tpu.core_type<tc>, window_params = [{transform_indices = @transform_0, window_bounds = array<i64: 2, 4, 2, 128>}, {transform_indices = @transform_1, window_bounds = array<i64: 2, 4, 2, 128>}, {transform_indices = @transform_2, window_bounds = array<i64: 2, 1>}]} {
    %c0_i32 = arith.constant 0 : i32
    %0 = arith.cmpi eq, %arg2, %c0_i32 : i32
    %1 = arith.extui %0 : i1 to i32
    %c0_i32_0 = arith.constant 0 : i32
    %2 = arith.cmpi ne, %1, %c0_i32_0 : i32
    scf.if %2 {
      %cst_16 = arith.constant 0.000000e+00 : f32
      %15 = vector.broadcast %cst_16 : f32 to vector<2x2x128xf32>
      %c0_17 = arith.constant 0 : index
      %c0_18 = arith.constant 0 : index
      %c0_19 = arith.constant 0 : index
      %16 = vector.load %arg6[%c0_17, %c0_18, %c0_19] : memref<2x2x128xf32, #tpu.memory_space<vmem>>, vector<2x2x128xf32>
      tpu.vector_store %arg6[%c0_17, %c0_18, %c0_19], %15 {strides = array<i32>} : memref<2x2x128xf32, #tpu.memory_space<vmem>>, vector<2x2x128xf32>,
    } else {
    }
    %c0 = arith.constant 0 : index
    %c0_1 = arith.constant 0 : index
    %c0_2 = arith.constant 0 : index
    %c0_3 = arith.constant 0 : index
    %3 = vector.load %arg3[%c0, %c0_1, %c0_2, %c0_3] : memref<2x4x2x128xf32, #tpu.memory_space<vmem>>, vector<2x4x2x128xf32>
    %c0_4 = arith.constant 0 : index
    %c0_5 = arith.constant 0 : index
    %c0_6 = arith.constant 0 : index
    %c0_7 = arith.constant 0 : index
    %4 = vector.load %arg4[%c0_4, %c0_5, %c0_6, %c0_7] : memref<2x4x2x128xf32, #tpu.memory_space<vmem>>, vector<2x4x2x128xf32>
    %5 = arith.subf %3, %4 : vector<2x4x2x128xf32>
    %6 = arith.mulf %5, %5 : vector<2x4x2x128xf32>
    %cst = arith.constant dense<0.000000e+00> : vector<2x2x128xf32>
    %7 = vector.multi_reduction <add>, %6, %cst [1] : vector<2x4x2x128xf32> to vector<2x2x128xf32>
    %8 = math.sqrt %7 : vector<2x2x128xf32>
    %c0_8 = arith.constant 0 : index
    %c0_9 = arith.constant 0 : index
    %c0_10 = arith.constant 0 : index
    %9 = vector.load %arg6[%c0_8, %c0_9, %c0_10] : memref<2x2x128xf32, #tpu.memory_space<vmem>>, vector<2x2x128xf32>
    %10 = arith.addf %9, %8 : vector<2x2x128xf32>
    %c0_11 = arith.constant 0 : index
    %c0_12 = arith.constant 0 : index
    %c0_13 = arith.constant 0 : index
    %11 = vector.load %arg6[%c0_11, %c0_12, %c0_13] : memref<2x2x128xf32, #tpu.memory_space<vmem>>, vector<2x2x128xf32>
    tpu.vector_store %arg6[%c0_11, %c0_12, %c0_13], %10 {strides = array<i32>} : memref<2x2x128xf32, #tpu.memory_space<vmem>>, vector<2x2x128xf32>,
    %c0_i32_14 = arith.constant 0 : i32
    %12 = arith.cmpi eq, %arg2, %c0_i32_14 : i32
    %13 = arith.extui %12 : i1 to i32
    %c0_i32_15 = arith.constant 0 : i32
    %14 = arith.cmpi ne, %13, %c0_i32_15 : i32
    scf.if %14 {
      %c0_16 = arith.constant 0 : index
      %c0_17 = arith.constant 0 : index
      %c0_18 = arith.constant 0 : index
      %15 = vector.load %arg6[%c0_16, %c0_17, %c0_18] : memref<2x2x128xf32, #tpu.memory_space<vmem>>, vector<1x2x128xf32>
      %16 = vector.shape_cast %15 : vector<1x2x128xf32> to vector<2x128xf32>
      %17 = vector.shape_cast %16 : vector<2x128xf32> to vector<1x2x128xf32>
      %cst_19 = arith.constant dense<0.000000e+00> : vector<1xf32>
      %18 = vector.multi_reduction <add>, %17, %cst_19 [1, 2] : vector<1x2x128xf32> to vector<1xf32>
      %19 = vector.shape_cast %18 : vector<1xf32> to vector<1x1x1xf32>
      %20 = vector.extract %19[0, 0, 0] : f32 from vector<1x1x1xf32>
      %c0_20 = arith.constant 0 : index
      %c0_21 = arith.constant 0 : index
      %21 = memref.load %arg5[%c0_20, %c0_21] : memref<2x1xf32, #tpu.memory_space<smem>>
      memref.store %20, %arg5[%c0_20, %c0_21] : memref<2x1xf32, #tpu.memory_space<smem>>
      %c1 = arith.constant 1 : index
      %c0_22 = arith.constant 0 : index
      %c0_23 = arith.constant 0 : index
      %22 = vector.load %arg6[%c1, %c0_22, %c0_23] : memref<2x2x128xf32, #tpu.memory_space<vmem>>, vector<1x2x128xf32>
      %23 = vector.shape_cast %22 : vector<1x2x128xf32> to vector<2x128xf32>
      %24 = vector.shape_cast %23 : vector<2x128xf32> to vector<1x2x128xf32>
      %cst_24 = arith.constant dense<0.000000e+00> : vector<1xf32>
      %25 = vector.multi_reduction <add>, %24, %cst_24 [1, 2] : vector<1x2x128xf32> to vector<1xf32>
      %26 = vector.shape_cast %25 : vector<1xf32> to vector<1x1x1xf32>
      %27 = vector.extract %26[0, 0, 0] : f32 from vector<1x1x1xf32>
      %c1_25 = arith.constant 1 : index
      %c0_26 = arith.constant 0 : index
      %28 = memref.load %arg5[%c1_25, %c0_26] : memref<2x1xf32, #tpu.memory_space<smem>>
      memref.store %27, %arg5[%c1_25, %c0_26] : memref<2x1xf32, #tpu.memory_space<smem>>
    } else {
    }
    return
  }
  func.func @transform_0(%arg0: i32, %arg1: i32, %arg2: i32) -> (i32, i32, i32, i32) {
    %c1_i32 = arith.constant 1 : i32
    %0 = arith.muli %arg1, %c1_i32 : i32
    %1 = arith.addi %0, %arg2 : i32
    %c0_i32 = arith.constant 0 : i32
    %2 = arith.minsi %1, %c0_i32 : i32
    %c0_i32_0 = arith.constant 0 : i32
    %c0_i32_1 = arith.constant 0 : i32
    %c0_i32_2 = arith.constant 0 : i32
    return %arg0, %c0_i32_0, %2, %c0_i32_1 : i32, i32, i32, i32
  }
  func.func @transform_1(%arg0: i32, %arg1: i32, %arg2: i32) -> (i32, i32, i32, i32) {
    %c1_i32 = arith.constant 1 : i32
    %0 = arith.muli %arg1, %c1_i32 : i32
    %1 = arith.addi %0, %arg2 : i32
    %c0_i32 = arith.constant 0 : i32
    %2 = arith.minsi %1, %c0_i32 : i32
    %c0_i32_0 = arith.constant 0 : i32
    %c0_i32_1 = arith.constant 0 : i32
    %c0_i32_2 = arith.constant 0 : i32
    return %arg0, %c0_i32_0, %2, %c0_i32_1 : i32, i32, i32, i32
  }
  func.func @transform_2(%arg0: i32, %arg1: i32, %arg2: i32) -> (i32, i32) {
    %c0_i32 = arith.constant 0 : i32
    return %arg0, %arg1 : i32, i32
  }
}

</mosaic_0001>

<llo_original>
// kernel: _l2_mean_norm.1
$region0: #{_l2_mean_norm.1}
  #allocation0 [shape = 'u32[]', space=smem, size = 0x4, offset = 0x4, fixed_abs, tag = 'smem constant byte address 0x4 - core index']
  #allocation1 [shape = 'u32[144,128]{1,0:T(1,128)}', space=vmem, size = 0x12000, scoped, tag = 'internal scratch']
  #allocation2 [shape = 'f32[2,2,128]{2,1,0:T(2,128)}', space=vmem, size = 0x800, scoped, tag = 'scratch operand']
  %s0 = inlined_call_operand.vmem [shape: f32[2,4,2,128], index: 0, kind: input, shape index: {}]
  %s1 = inlined_call_operand.vmem [shape: f32[2,4,2,128], index: 1, kind: input, shape index: {}]
  %s2 = inlined_call_operand.vmem [shape: f32[2,1], index: 2, kind: output, shape index: {}]
  %s3 = sld [smem:[#allocation0]]
  $region26: #{_l2_mean_norm.1} parent=0
    _
  %s5 = ssub.s32 1, %s3
  %s6 = scalar_select 0, %s5, %s3
  $region1: #{_l2_mean_norm.1} parent=0
    #allocation3 [shape = 'u8[1024]{0}', space=smem, size = 0x400, scoped, tag = 'output window, operand 0, single buffered']
    #allocation4 [shape = 's32[1]{0}', space=sflag, size = 0x4, scoped, tag = 'scoped memory for _l2_mean_norm.1']
    %7 = vsyncpa [#allocation4], 0
    // Predicated region
    $region2: #{_l2_mean_norm.1} parent=1 // pred_check
      _
    $region3: #{_l2_mean_norm.1} parent=1 // pred_check_branch
      %9 = sbr.rel (0) target = $region5
    $region4: #{_l2_mean_norm.1} parent=1 // pred_region
      %s10 = sadd.s32 0, 0
      %p11 = scmp.lt.s32.totalorder %s10, 0
      %s12 = scalar_select %p11, %s10, 0
      %p13 = scmp.lt.s32.totalorder %s12, 0
      %s14 = scalar_select %p13, %s12, 0
      %s15 = smul.addr %s14, 2
      %s16 = scalar_lea.vmem %s0, %s15
      %s17 = sadd.s32 0, 0
      %p18 = scmp.lt.s32.totalorder %s17, 0
      %s19 = scalar_select %p18, %s17, 0
    $region5: #{_l2_mean_norm.1} parent=1 // pred_fallthru
      _
    // Predicated region
    $region6: #{_l2_mean_norm.1} parent=1 // pred_check
      _
    $region7: #{_l2_mean_norm.1} parent=1 // pred_check_branch
      %21 = sbr.rel (0) target = $region9
    $region8: #{_l2_mean_norm.1} parent=1 // pred_region
      %s22 = sadd.s32 0, 0
      %p23 = scmp.lt.s32.totalorder %s22, 0
      %s24 = scalar_select %p23, %s22, 0
      %p25 = scmp.lt.s32.totalorder %s24, 0
      %s26 = scalar_select %p25, %s24, 0
      %s27 = smul.addr %s26, 2
      %s28 = scalar_lea.vmem %s1, %s27
      %s29 = sadd.s32 0, 0
      %p30 = scmp.lt.s32.totalorder %s29, 0
      %s31 = scalar_select %p30, %s29, 0
    $region9: #{_l2_mean_norm.1} parent=1 // pred_fallthru
      _
    %s32 = sadd.s32 0, 0
    %p33 = scmp.lt.s32.totalorder %s32, 0
    %s34 = scalar_select %p33, %s32, 0
    %p35 = scmp.lt.s32.totalorder %s34, 0
    %s36 = scalar_select %p35, %s34, 0
    %s37 = smul.addr %s36, 2
    %s38 = scalar_lea.vmem %s0, %s37
    %s39 = sadd.s32 0, 0
    %p40 = scmp.lt.s32.totalorder %s39, 0
    %s41 = scalar_select %p40, %s39, 0
    %p42 = scmp.lt.s32.totalorder %s41, 0
    %s43 = scalar_select %p42, %s41, 0
    %s44 = smul.addr %s43, 2
    %s45 = scalar_lea.vmem %s1, %s44
    %s46 = sadd.s32 0, 0
    %p47 = scmp.lt.s32.totalorder %s46, 0
    %s48 = scalar_select %p47, %s46, 0
    %p49 = scmp.lt.s32.totalorder %s48, 0
    %s50 = scalar_select %p49, %s48, 0
    %s51 = smul.addr %s50, 2
    %s52 = scalar_lea.vmem %s0, %s51
    %s53 = sadd.s32 0, 0
    %p54 = scmp.lt.s32.totalorder %s53, 0
    %s55 = scalar_select %p54, %s53, 0
    %s56 = sadd.s32 0, 0
    %p57 = scmp.lt.s32.totalorder %s56, 0
    %s58 = scalar_select %p57, %s56, 0
    %p59 = scmp.lt.s32.totalorder %s58, 0
    %s60 = scalar_select %p59, %s58, 0
    %s61 = smul.addr %s60, 2
    %s62 = scalar_lea.vmem %s1, %s61
    %s63 = sadd.s32 0, 0
    %p64 = scmp.lt.s32.totalorder %s63, 0
    %s65 = scalar_select %p64, %s63, 0
    %p66 = scmp.eq.s32.totalorder 0, 0
    // Predicated region
    $region10: #{_l2_mean_norm.1} parent=1 // pred_check
      %p67 = pneg %p66
    $region11: #{_l2_mean_norm.1} parent=1 // pred_check_branch
      %69 = sbr.rel (%p67) target = $region13
    $region12: #{_l2_mean_norm.1} parent=1 // pred_region
      %70 = vst [vmem:[#allocation2] sm:$0x3] 0.0
      %71 = vst [vmem:[#allocation2 + $0x2] sm:$0x3] 0.0
    $region13: #{_l2_mean_norm.1} parent=1 // pred_fallthru
      _
    %v72 = vld [vmem:[%s52] sm:$0x3]
    %v73 = vld [vmem:[%s52 + $0x2] sm:$0x3]
    %v74 = vld [vmem:[%s52 + $0x4] sm:$0x3]
    %v75 = vld [vmem:[%s52 + $0x6] sm:$0x3]
    %v76 = vld [vmem:[%s52 + $0x8] sm:$0x3]
    %v77 = vld [vmem:[%s52 + $0xa] sm:$0x3]
    %v78 = vld [vmem:[%s52 + $0xc] sm:$0x3]
    %v79 = vld [vmem:[%s52 + $0xe] sm:$0x3]
    %v80 = vld [vmem:[%s62] sm:$0x3]
    %v81 = vld [vmem:[%s62 + $0x2] sm:$0x3]
    %v82 = vld [vmem:[%s62 + $0x4] sm:$0x3]
    %v83 = vld [vmem:[%s62 + $0x6] sm:$0x3]
    %v84 = vld [vmem:[%s62 + $0x8] sm:$0x3]
    %v85 = vld [vmem:[%s62 + $0xa] sm:$0x3]
    %v86 = vld [vmem:[%s62 + $0xc] sm:$0x3]
    %v87 = vld [vmem:[%s62 + $0xe] sm:$0x3]
    %v88 = vsub.f32 %v72, %v80
    %v89 = vsub.f32 %v73, %v81
    %v90 = vsub.f32 %v74, %v82
    %v91 = vsub.f32 %v75, %v83
    %v92 = vsub.f32 %v76, %v84
    %v93 = vsub.f32 %v77, %v85
    %v94 = vsub.f32 %v78, %v86
    %v95 = vsub.f32 %v79, %v87
    %v96 = vmul.f32 %v88, %v88
    %v97 = vmul.f32 %v89, %v89
    %v98 = vmul.f32 %v90, %v90
    %v99 = vmul.f32 %v91, %v91
    %v100 = vmul.f32 %v92, %v92
    %v101 = vmul.f32 %v93, %v93
    %v102 = vmul.f32 %v94, %v94
    %v103 = vmul.f32 %v95, %v95
    %vm104 = vcmask 1041408
    %v105 = vsel %vm104, %v96, 0.0
    %v106 = vsel %vm104, %v97, 0.0
    %v107 = vadd.f32 %v105, %v106
    %v108 = vsel %vm104, %v98, 0.0
    %v109 = vadd.f32 %v107, %v108
    %v110 = vsel %vm104, %v99, 0.0
    %v111 = vadd.f32 %v109, %v110
    %v112 = vsel %vm104, %v100, 0.0
    %v113 = vsel %vm104, %v101, 0.0
    %v114 = vadd.f32 %v112, %v113
    %v115 = vsel %vm104, %v102, 0.0
    %v116 = vadd.f32 %v114, %v115
    %v117 = vsel %vm104, %v103, 0.0
    %v118 = vadd.f32 %v116, %v117
    %v119 = vrsqrt.pop %v111
    %v120 = vmul.f32 %v111, %v119
    %vm121 = vcmp.eq.f32.partialorder %v111, inf
    %v122 = vsel %vm121, %v111, %v120
    %vm123 = vcmp.eq.f32.partialorder %v111, 0.0
    %v124 = vand.u32 %v111, 2147483648
    %v125 = vsel %vm123, %v124, %v122
    %v126 = vrsqrt.pop %v118
    %v127 = vmul.f32 %v118, %v126
    %vm128 = vcmp.eq.f32.partialorder %v118, inf
    %v129 = vsel %vm128, %v118, %v127
    %vm130 = vcmp.eq.f32.partialorder %v118, 0.0
    %v131 = vand.u32 %v118, 2147483648
    %v132 = vsel %vm130, %v131, %v129
    %v133 = vld [vmem:[#allocation2] sm:$0x3]
    %v134 = vld [vmem:[#allocation2 + $0x2] sm:$0x3]
    %v135 = vadd.f32 %v133, %v125
    %v136 = vadd.f32 %v134, %v132
    %137 = vst [vmem:[#allocation2] sm:$0x3] %v135
    %138 = vst [vmem:[#allocation2 + $0x2] sm:$0x3] %v136
    // Predicated region
    $region14: #{_l2_mean_norm.1} parent=1 // pred_check
      %p139 = pneg %p66
    $region15: #{_l2_mean_norm.1} parent=1 // pred_check_branch
      %141 = sbr.rel (%p139) target = $region17
    $region16: #{_l2_mean_norm.1} parent=1 // pred_region
      %v142 = vld [vmem:[#allocation2] sm:$0x3]
      %v143 = vsel %vm104, %v142, 0.0
      %144 = vadd.xlane.f32.xlu0 %v143
      %v145 = vpop.xlane.xlu0 %144
      %v146 = vrot.slane %v145, 4
      %v147 = vadd.f32 %v145, %v146
      %v148 = vrot.slane %v147, 2
      %v149 = vadd.f32 %v147, %v148
      %v150 = vrot.slane %v149, 1
      %v151 = vadd.f32 %v149, %v150
      %s152 = vtos %v151
      %s153 = scalar_lea.smem [#allocation3], 0
      %154 = sst [smem:[%s153]] %s152
      %s155 = scalar_lea.vmem [#allocation2], 2
      %v156 = vld [vmem:[%s155] sm:$0x3]
      %v157 = vsel %vm104, %v156, 0.0
      %158 = vadd.xlane.f32.xlu0 %v157
      %v159 = vpop.xlane.xlu0 %158
      %v160 = vrot.slane %v159, 4
      %v161 = vadd.f32 %v159, %v160
      %v162 = vrot.slane %v161, 2
      %v163 = vadd.f32 %v161, %v162
      %v164 = vrot.slane %v163, 1
      %v165 = vadd.f32 %v163, %v164
      %s166 = vtos %v165
      %s167 = scalar_lea.smem [#allocation3], 128
      %168 = sst [smem:[%s167]] %s166
    $region17: #{_l2_mean_norm.1} parent=1 // pred_fallthru
      _
    // Predicated region
    $region18: #{_l2_mean_norm.1} parent=1 // pred_check
      _
    $region19: #{_l2_mean_norm.1} parent=1 // pred_check_branch
      %170 = sbr.rel (0) target = $region21
    $region20: #{_l2_mean_norm.1} parent=1 // pred_region
      %s172 = ssub.s32 32, 32
      %173 = vsyncadd [#allocation4], %s172
      %s175 = sshll.u32 %s2, 4
      %s176 = int_to_ptr.vmem [resolvable:$true] %s175
      %178 = dma.smem_to_vmem [#allocation3], 32, %s176, [#allocation4]
    $region21: #{_l2_mean_norm.1} parent=1 // pred_fallthru
      _
    // Predicated region
    $region22: #{_l2_mean_norm.1} parent=1 // pred_check
      _
    $region23: #{_l2_mean_norm.1} parent=1 // pred_check_branch
      %180 = sbr.rel (0) target = $region25
    $region24: #{_l2_mean_norm.1} parent=1 // pred_region
      %181 = dma.done [#allocation4], 32
    $region25: #{_l2_mean_norm.1} parent=1 // pred_fallthru
      _
    %182 = sfence
    %183 = vsyncpa [#allocation4], 1

</llo_original>
